<compile_context>
chip_gen: v7x
topology: tpu7x:2x2x1
jax: 0.10.0
libtpu: 0.0.40
codegen_flags: <defaults>
</compile_context>

<pallas_src>
import jax
import jax.numpy as jnp
from jax.experimental import pallas as pl
from jax.experimental.pallas import tpu as pltpu

BACKS = 15
INPUT_DIM = 4 * BACKS + 2          # len(['Close','SMA50','SMA200','SMA1000']) * BACKS + 2 = 62
HID1 = 12                          # fc1 output width
OUTPUT_DIM = 16                    # output_dim of the module (hidden width of fc1_1)
N_ACTIONS = 3                      # fc2 output / softmax width
N_PAD = 128                        # lane-dense padded width for hidden/out tiles
NEG_PAD = -1.0e4                   # padded-lane logit bias -> exp underflows to exactly 0


def actor_kernel(s_ref, w1_ref, b1_ref, w2_ref, b2_ref, w3_ref, b3_ref, o_ref):
    x = s_ref[...]                                                    # (TB, 62) f32

    # fc1 + ReLU  (weights zero-padded to 128 output lanes -> lane-dense h1)
    h1 = jnp.dot(x, w1_ref[...], preferred_element_type=jnp.float32) + b1_ref[...]
    h1 = jnp.maximum(h1, 0.0)

    # fc1_1 + ReLU
    h2 = jnp.dot(h1, w2_ref[...], preferred_element_type=jnp.float32) + b2_ref[...]
    h2 = jnp.maximum(h2, 0.0)

    # fc2 — padded lanes carry bias NEG_PAD, real logits live in lanes 0..2.
    logits = jnp.dot(h2, w3_ref[...], preferred_element_type=jnp.float32) + b3_ref[...]

    # 3-wide softmax built from explicit column slices (no full-width axis=-1
    # reduction). Padded lanes: exp(NEG_PAD - m) underflows to exactly 0.
    m = jnp.maximum(jnp.maximum(logits[:, 0:1], logits[:, 1:2]), logits[:, 2:3])
    e = jnp.exp(logits - m)                                           # (TB, 128)
    denom = e[:, 0:1] + e[:, 1:2] + e[:, 2:3]                         # (TB, 1)
    # Exact reciprocal: approx=True left rows summing to 1 only within ~1e-3,
    # which broke the self-check and would bias PPO importance ratios.
    inv = pl.reciprocal(denom, approx=False)

    # Lane-dense bf16 store: probs in lanes 0..2, zeros in padded lanes.
    o_ref[...] = (e * inv).astype(o_ref.dtype)


def prepare_actor_params(w1, b1, w2, b2, w3, b3):
    """Pad parameters to lane-dense shapes ONCE (hoisted off the per-call path).

    Weights are (in_features, out_features); biases are (1, out_features).
    """
    f32 = jnp.float32
    w1p = jnp.zeros((INPUT_DIM, N_PAD), f32).at[:, :HID1].set(w1.astype(f32))
    b1p = jnp.zeros((1, N_PAD), f32).at[:, :HID1].set(b1.astype(f32))
    w2p = jnp.zeros((N_PAD, N_PAD), f32).at[:HID1, :OUTPUT_DIM].set(w2.astype(f32))
    b2p = jnp.zeros((1, N_PAD), f32).at[:, :OUTPUT_DIM].set(b2.astype(f32))
    w3p = jnp.zeros((N_PAD, N_PAD), f32).at[:OUTPUT_DIM, :N_ACTIONS].set(w3.astype(f32))
    b3p = jnp.full((1, N_PAD), NEG_PAD, f32).at[:, :N_ACTIONS].set(b3.astype(f32))
    return w1p, b1p, w2p, b2p, w3p, b3p


def _round_up(x, m):
    return (x + m - 1) // m * m


def _choose_tile_b(B, block_b):
    """Batch tile: multiple of 16 (bf16 sublane pack) or the full batch dim."""
    if B % 16 != 0:
        return B                       # tiny / ragged batch: one full-batch tile
    tb = min(block_b, B)
    if B >= 32:
        # Ensure >= 2 grid steps so both v7x TensorCores get work (no-op on
        # single-TC v5e/v6e besides finer pipelining).
        tb = min(tb, _round_up(pl.cdiv(B, 2), 16))
    return tb


def actor_forward(s, params, *, block_b=2048):
    w1p, b1p, w2p, b2p, w3p, b3p = params
    B = s.shape[0]
    tb = _choose_tile_b(B, block_b)
    grid = (pl.cdiv(B, tb),)

    batched = pl.BlockSpec((tb, INPUT_DIM), lambda i: (i, 0))
    resident = lambda shape: pl.BlockSpec(shape, lambda i: (0, 0))   # VMEM-resident weights

    flops = 2 * B * (INPUT_DIM * N_PAD + N_PAD * N_PAD + N_PAD * N_PAD)
    bytes_accessed = (4 * B * INPUT_DIM + 2 * B * N_PAD
                      + 4 * (w1p.size + b1p.size + w2p.size + b2p.size
                             + w3p.size + b3p.size))

    out = pl.pallas_call(
        actor_kernel,
        out_shape=jax.ShapeDtypeStruct((B, N_PAD), jnp.bfloat16),
        grid=grid,
        in_specs=[
            batched,
            resident(w1p.shape), resident(b1p.shape),
            resident(w2p.shape), resident(b2p.shape),
            resident(w3p.shape), resident(b3p.shape),
        ],
        out_specs=pl.BlockSpec((tb, N_PAD), lambda i: (i, 0)),
        compiler_params=pltpu.CompilerParams(
            dimension_semantics=("parallel",)),
        cost_estimate=pl.CostEstimate(
            flops=flops,
            transcendentals=B * (N_PAD + 1),
            bytes_accessed=bytes_accessed),
    )(s, w1p, b1p, w2p, b2p, w3p, b3p)

    # Consumers that can index the padded bf16 array directly should skip this
    # slice/cast; it exists only to match the torch module's (B, 3) f32 output.
    return out[:, :N_ACTIONS].astype(jnp.float32)


def reference_forward(s, w1, b1, w2, b2, w3, b3):
    h1 = jnp.maximum(s @ w1 + b1, 0.0)
    h2 = jnp.maximum(h1 @ w2 + b2, 0.0)
    logits = h2 @ w3 + b3
    return jax.nn.softmax(logits, axis=-1)


if __name__ == "__main__":
    key = jax.random.PRNGKey(0)
    k_s, k_w1, k_b1, k_w2, k_b2, k_w3, k_b3 = jax.random.split(key, 7)

    # Deterministic synthetic parameters (nn.Linear shapes, stored as (in, out)).
    w1 = jax.random.normal(k_w1, (INPUT_DIM, HID1), dtype=jnp.float32) * 0.1
    b1 = jax.random.normal(k_b1, (1, HID1), dtype=jnp.float32) * 0.1
    w2 = jax.random.normal(k_w2, (HID1, OUTPUT_DIM), dtype=jnp.float32) * 0.1
    b2 = jax.random.normal(k_b2, (1, OUTPUT_DIM), dtype=jnp.float32) * 0.1
    w3 = jax.random.normal(k_w3, (OUTPUT_DIM, N_ACTIONS), dtype=jnp.float32) * 0.1
    b3 = jax.random.normal(k_b3, (1, N_ACTIONS), dtype=jnp.float32) * 0.1

    params = prepare_actor_params(w1, b1, w2, b2, w3, b3)

    # Rollout-sized batch: 2 grid steps (128-row tiles) + resident weights.
    B = 256
    s = jax.random.normal(k_s, (B, INPUT_DIM), dtype=jnp.float32)
    out = jax.block_until_ready(actor_forward(s, params))
    ref = reference_forward(s, w1, b1, w2, b2, w3, b3)
    assert out.shape == (B, N_ACTIONS)
    # Tolerances cover the bf16 output quantization (~4e-3 relative).
    assert jnp.allclose(out, ref, atol=5e-3, rtol=1e-2), "mismatch vs reference (B=256)"
    assert jnp.allclose(jnp.sum(out, axis=-1), 1.0, atol=1e-2), "softmax rows must sum to ~1"

    # Tiny per-env-step batch (single full-batch tile path).
    B2 = 8
    s2 = jax.random.normal(jax.random.PRNGKey(1), (B2, INPUT_DIM), dtype=jnp.float32)
    out2 = jax.block_until_ready(actor_forward(s2, params))
    ref2 = reference_forward(s2, w1, b1, w2, b2, w3, b3)
    assert out2.shape == (B2, N_ACTIONS)
    assert jnp.allclose(out2, ref2, atol=5e-3, rtol=1e-2), "mismatch vs reference (B=8)"
    assert jnp.allclose(jnp.sum(out2, axis=-1), 1.0, atol=1e-2), "softmax rows must sum to ~1 (B=8)"

    print("KERNEL_OK")
</pallas_src>

<mosaic_0001>
module attributes {stable_mosaic.version = 11 : i64} {
  func.func @actor_kernel(%arg0: i32, %arg1: memref<128x62xf32, #tpu.memory_space<vmem>>, %arg2: memref<62x128xf32, #tpu.memory_space<vmem>>, %arg3: memref<1x128xf32, #tpu.memory_space<vmem>>, %arg4: memref<128x128xf32, #tpu.memory_space<vmem>>, %arg5: memref<1x128xf32, #tpu.memory_space<vmem>>, %arg6: memref<128x128xf32, #tpu.memory_space<vmem>>, %arg7: memref<1x128xf32, #tpu.memory_space<vmem>>, %arg8: memref<128x128xbf16, #tpu.memory_space<vmem>>) attributes {dimension_semantics = [#tpu.dimension_semantics<parallel>], iteration_bounds = array<i64: 2>, scalar_prefetch = 0 : i64, scratch_operands = 0 : i64, tpu.core_type = #tpu.core_type<tc>, window_params = [{transform_indices = @transform_0, window_bounds = array<i64: 128, 62>}, {pipeline_mode = #tpu.pipeline_mode<synchronous>, transform_indices = @transform_1, window_bounds = array<i64: 62, 128>}, {pipeline_mode = #tpu.pipeline_mode<synchronous>, transform_indices = @transform_2, window_bounds = array<i64: 1, 128>}, {pipeline_mode = #tpu.pipeline_mode<synchronous>, transform_indices = @transform_3, window_bounds = array<i64: 128, 128>}, {pipeline_mode = #tpu.pipeline_mode<synchronous>, transform_indices = @transform_4, window_bounds = array<i64: 1, 128>}, {pipeline_mode = #tpu.pipeline_mode<synchronous>, transform_indices = @transform_5, window_bounds = array<i64: 128, 128>}, {pipeline_mode = #tpu.pipeline_mode<synchronous>, transform_indices = @transform_6, window_bounds = array<i64: 1, 128>}, {transform_indices = @transform_7, window_bounds = array<i64: 128, 128>}]} {
    %c0 = arith.constant 0 : index
    %c0_0 = arith.constant 0 : index
    %0 = vector.load %arg1[%c0, %c0_0] : memref<128x62xf32, #tpu.memory_space<vmem>>, vector<128x62xf32>
    %c0_1 = arith.constant 0 : index
    %c0_2 = arith.constant 0 : index
    %1 = vector.load %arg2[%c0_1, %c0_2] : memref<62x128xf32, #tpu.memory_space<vmem>>, vector<62x128xf32>
    %cst = arith.constant dense<0.000000e+00> : vector<128x128xf32>
    %2 = tpu.matmul %0, %1, %cst {dimension_numbers = #tpu.dot_dimension_numbers<[1], [0], [0], [1], [0, 0, 1, 1], [], []>} : vector<128x62xf32>, vector<62x128xf32>, vector<128x128xf32> -> vector<128x128xf32>
    %c0_3 = arith.constant 0 : index
    %c0_4 = arith.constant 0 : index
    %3 = vector.load %arg3[%c0_3, %c0_4] : memref<1x128xf32, #tpu.memory_space<vmem>>, vector<1x128xf32>
    %4 = vector.broadcast %3 : vector<1x128xf32> to vector<128x128xf32>
    %5 = arith.addf %2, %4 : vector<128x128xf32>
    %cst_5 = arith.constant 0.000000e+00 : f32
    %6 = vector.broadcast %cst_5 : f32 to vector<128x128xf32>
    %7 = arith.maximumf %5, %6 : vector<128x128xf32>
    %c0_6 = arith.constant 0 : index
    %c0_7 = arith.constant 0 : index
    %8 = vector.load %arg4[%c0_6, %c0_7] : memref<128x128xf32, #tpu.memory_space<vmem>>, vector<128x128xf32>
    %cst_8 = arith.constant dense<0.000000e+00> : vector<128x128xf32>
    %9 = tpu.matmul %7, %8, %cst_8 {dimension_numbers = #tpu.dot_dimension_numbers<[1], [0], [0], [1], [0, 0, 1, 1], [], []>} : vector<128x128xf32>, vector<128x128xf32>, vector<128x128xf32> -> vector<128x128xf32>
    %c0_9 = arith.constant 0 : index
    %c0_10 = arith.constant 0 : index
    %10 = vector.load %arg5[%c0_9, %c0_10] : memref<1x128xf32, #tpu.memory_space<vmem>>, vector<1x128xf32>
    %11 = vector.broadcast %10 : vector<1x128xf32> to vector<128x128xf32>
    %12 = arith.addf %9, %11 : vector<128x128xf32>
    %cst_11 = arith.constant 0.000000e+00 : f32
    %13 = vector.broadcast %cst_11 : f32 to vector<128x128xf32>
    %14 = arith.maximumf %12, %13 : vector<128x128xf32>
    %c0_12 = arith.constant 0 : index
    %c0_13 = arith.constant 0 : index
    %15 = vector.load %arg6[%c0_12, %c0_13] : memref<128x128xf32, #tpu.memory_space<vmem>>, vector<128x128xf32>
    %cst_14 = arith.constant dense<0.000000e+00> : vector<128x128xf32>
    %16 = tpu.matmul %14, %15, %cst_14 {dimension_numbers = #tpu.dot_dimension_numbers<[1], [0], [0], [1], [0, 0, 1, 1], [], []>} : vector<128x128xf32>, vector<128x128xf32>, vector<128x128xf32> -> vector<128x128xf32>
    %c0_15 = arith.constant 0 : index
    %c0_16 = arith.constant 0 : index
    %17 = vector.load %arg7[%c0_15, %c0_16] : memref<1x128xf32, #tpu.memory_space<vmem>>, vector<1x128xf32>
    %18 = vector.broadcast %17 : vector<1x128xf32> to vector<128x128xf32>
    %19 = arith.addf %16, %18 : vector<128x128xf32>
    %20 = vector.extract_strided_slice %19 {offsets = [0, 0], sizes = [128, 1], strides = [1, 1]} : vector<128x128xf32> to vector<128x1xf32>
    %21 = vector.extract_strided_slice %19 {offsets = [0, 1], sizes = [128, 1], strides = [1, 1]} : vector<128x128xf32> to vector<128x1xf32>
    %22 = arith.maximumf %20, %21 : vector<128x1xf32>
    %23 = vector.extract_strided_slice %19 {offsets = [0, 2], sizes = [128, 1], strides = [1, 1]} : vector<128x128xf32> to vector<128x1xf32>
    %24 = arith.maximumf %22, %23 : vector<128x1xf32>
    %25 = vector.broadcast %24 : vector<128x1xf32> to vector<128x128xf32>
    %26 = arith.subf %19, %25 : vector<128x128xf32>
    %27 = math.exp %26 : vector<128x128xf32>
    %28 = vector.extract_strided_slice %27 {offsets = [0, 0], sizes = [128, 1], strides = [1, 1]} : vector<128x128xf32> to vector<128x1xf32>
    %29 = vector.extract_strided_slice %27 {offsets = [0, 1], sizes = [128, 1], strides = [1, 1]} : vector<128x128xf32> to vector<128x1xf32>
    %30 = arith.addf %28, %29 : vector<128x1xf32>
    %31 = vector.extract_strided_slice %27 {offsets = [0, 2], sizes = [128, 1], strides = [1, 1]} : vector<128x128xf32> to vector<128x1xf32>
    %32 = arith.addf %30, %31 : vector<128x1xf32>
    %33 = tpu.reciprocal %32 : vector<128x1xf32> -> vector<128x1xf32>
    %34 = vector.broadcast %33 : vector<128x1xf32> to vector<128x128xf32>
    %35 = arith.mulf %27, %34 : vector<128x128xf32>
    %36 = arith.truncf %35 : vector<128x128xf32> to vector<128x128xbf16>
    %c0_17 = arith.constant 0 : index
    %c0_18 = arith.constant 0 : index
    %37 = vector.load %arg8[%c0_17, %c0_18] : memref<128x128xbf16, #tpu.memory_space<vmem>>, vector<128x128xbf16>
    tpu.vector_store %arg8[%c0_17, %c0_18], %36 {strides = array<i32>} : memref<128x128xbf16, #tpu.memory_space<vmem>>, vector<128x128xbf16>,
    return
  }
  func.func @transform_0(%arg0: i32) -> (i32, i32) {
    %c0_i32 = arith.constant 0 : i32
    %c0_i32_0 = arith.constant 0 : i32
    return %arg0, %c0_i32 : i32, i32
  }
  func.func @transform_1(%arg0: i32) -> (i32, i32) {
    %c0_i32 = arith.constant 0 : i32
    %c0_i32_0 = arith.constant 0 : i32
    %c0_i32_1 = arith.constant 0 : i32
    return %c0_i32, %c0_i32_0 : i32, i32
  }
  func.func @transform_2(%arg0: i32) -> (i32, i32) {
    %c0_i32 = arith.constant 0 : i32
    %c0_i32_0 = arith.constant 0 : i32
    %c0_i32_1 = arith.constant 0 : i32
    return %c0_i32, %c0_i32_0 : i32, i32
  }
  func.func @transform_3(%arg0: i32) -> (i32, i32) {
    %c0_i32 = arith.constant 0 : i32
    %c0_i32_0 = arith.constant 0 : i32
    %c0_i32_1 = arith.constant 0 : i32
    return %c0_i32, %c0_i32_0 : i32, i32
  }
  func.func @transform_4(%arg0: i32) -> (i32, i32) {
    %c0_i32 = arith.constant 0 : i32
    %c0_i32_0 = arith.constant 0 : i32
    %c0_i32_1 = arith.constant 0 : i32
    return %c0_i32, %c0_i32_0 : i32, i32
  }
  func.func @transform_5(%arg0: i32) -> (i32, i32) {
    %c0_i32 = arith.constant 0 : i32
    %c0_i32_0 = arith.constant 0 : i32
    %c0_i32_1 = arith.constant 0 : i32
    return %c0_i32, %c0_i32_0 : i32, i32
  }
  func.func @transform_6(%arg0: i32) -> (i32, i32) {
    %c0_i32 = arith.constant 0 : i32
    %c0_i32_0 = arith.constant 0 : i32
    %c0_i32_1 = arith.constant 0 : i32
    return %c0_i32, %c0_i32_0 : i32, i32
  }
  func.func @transform_7(%arg0: i32) -> (i32, i32) {
    %c0_i32 = arith.constant 0 : i32
    %c0_i32_0 = arith.constant 0 : i32
    return %arg0, %c0_i32 : i32, i32
  }
}

</mosaic_0001>

<llo_original>
// kernel: tpu_custom_call.1
$region0: #{tpu_custom_call.1}
  #allocation0 [shape = 'u32[]', space=smem, size = 0x4, offset = 0x4, fixed_abs, tag = 'smem constant byte address 0x4 - core index']
  #allocation1 [shape = 'u32[144,128]{1,0:T(1,128)}', space=vmem, size = 0x12000, scoped, tag = 'internal scratch']
  %s0 = inlined_call_operand.vmem [shape: f32[256,62], index: 0, kind: input, shape index: {}]
  %s1 = inlined_call_operand.vmem [shape: f32[62,128], index: 1, kind: input, shape index: {}]
  %s2 = inlined_call_operand.vmem [shape: f32[1,128], index: 2, kind: input, shape index: {}]
  %s3 = inlined_call_operand.vmem [shape: f32[128,128], index: 3, kind: input, shape index: {}]
  %s4 = inlined_call_operand.vmem [shape: f32[1,128], index: 4, kind: input, shape index: {}]
  %s5 = inlined_call_operand.vmem [shape: f32[128,128], index: 5, kind: input, shape index: {}]
  %s6 = inlined_call_operand.vmem [shape: f32[1,128], index: 6, kind: input, shape index: {}]
  %s7 = inlined_call_operand.hbm [shape: bf16[256,128], index: 7, kind: output, shape index: {}]
  %s8 = sld [smem:[#allocation0]]
  $region61: #{tpu_custom_call.1} parent=0
    _
  %s10 = ssub.s32 1, %s8
  %s11 = scalar_select 0, %s10, %s8
  $region1: #{tpu_custom_call.1} parent=0
    #allocation2 [shape = 'u8[65536]{0}', space=vmem, size = 0x10000, scoped, tag = 'output window, operand 0']
    #allocation3 [shape = 's32[2]{0}', space=sflag, size = 0x8, scoped, tag = 'scoped memory for tpu_custom_call.1']
    %12 = vsyncpa [#allocation3], 0
    %s13 = scalar_lea.sflag [#allocation3], 1
    %14 = vsyncpa %s13, 0
    loop: start=0, step=1, limit=4
    $region2: #{tpu_custom_call.1} parent=1 // loop_pre_header
      _
    $region3: #{tpu_custom_call.1} parent=1 // loop_header
      %s16 = sphi 0, %s20
      %p17 = scmp.ge.s32.totalorder %s16, 4
      %s26 = sphi 0, %s28
      %s29 = sphi 0, %s26
      %s30 = sphi 0, %s29
      %s46 = sphi 0, %s30
      %s50 = sphi 0, %s50
      %s52 = sphi 0, %s50
      %s53 = sphi 0, %s52
      %s67 = sphi 0, %s53
      %s71 = sphi 0, %s71
      %s73 = sphi 0, %s71
      %s74 = sphi 0, %s73
      %s88 = sphi 0, %s74
      %s92 = sphi 0, %s92
      %s94 = sphi 0, %s92
      %s95 = sphi 0, %s94
      %s109 = sphi 0, %s95
      %s113 = sphi 0, %s113
      %s115 = sphi 0, %s113
      %s116 = sphi 0, %s115
      %s130 = sphi 0, %s116
      %s134 = sphi 0, %s134
      %s136 = sphi 0, %s134
      %s137 = sphi 0, %s136
      %s151 = sphi 0, %s137
      %s155 = sphi 0, %s155
      %s157 = sphi 0, %s155
      %s158 = sphi 0, %s157
      %s172 = sphi 0, %s158
      %s178 = sphi 0, %s180
      %s181 = sphi 0, %s178
      %s182 = sphi 0, %s181
      %s198 = sphi 0, %s182
    $region4: #{tpu_custom_call.1} parent=1 // loop_header_branch
      %19 = sbr.rel (%p17) target = $region8
    $region5: #{tpu_custom_call.1} parent=1 // loop_body
      %s21 = ssub.s32 %s16, 1
      %s22 = ssub.s32 %s16, 2
      %s23 = sadd.s32 %s16, 1
      %s24 = ssub.s32 %s16, %s23
      %p25 = scmp.eq.s32.totalorder %s24, 0
      %s27 = sadd.s32 %s26, 1
      %s28 = scalar_select %p25, %s26, %s27
      %p31 = pneg %p25
      %p32 = scmp.eq.s32.totalorder %s16, 1
      %p33 = por %p31, %p32
      %p34 = scmp.ne.s32.totalorder %s26, %s29
      %p35 = scmp.eq.s32.totalorder %s16, 0
      %p36 = por %p34, %p35
      %p37 = scmp.ne.s32.totalorder %s26, %s29
      %p38 = scmp.eq.s32.totalorder %s21, 1
      %p39 = por %p37, %p38
      %p40 = scmp.ne.s32.totalorder %s29, %s30
      %p41 = scmp.eq.s32.totalorder %s21, 0
      %p42 = por %p40, %p41
      %p43 = scmp.ne.s32.totalorder %s29, %s30
      %p44 = scmp.eq.s32.totalorder %s22, 1
      %p45 = por %p43, %p44
      %p47 = scmp.ne.s32.totalorder %s30, %s46
      %p48 = scmp.eq.s32.totalorder %s22, 0
      %p49 = por %p47, %p48
      %s51 = sadd.s32 %s50, 1
      %p54 = scmp.eq.s32.totalorder %s16, 1
      %p55 = scmp.ne.s32.totalorder %s50, %s52
      %p56 = scmp.eq.s32.totalorder %s16, 0
      %p57 = por %p55, %p56
      %p58 = scmp.ne.s32.totalorder %s50, %s52
      %p59 = scmp.eq.s32.totalorder %s21, 1
      %p60 = por %p58, %p59
      %p61 = scmp.ne.s32.totalorder %s52, %s53
      %p62 = scmp.eq.s32.totalorder %s21, 0
      %p63 = por %p61, %p62
      %p64 = scmp.ne.s32.totalorder %s52, %s53
      %p65 = scmp.eq.s32.totalorder %s22, 1
      %p66 = por %p64, %p65
      %p68 = scmp.ne.s32.totalorder %s53, %s67
      %p69 = scmp.eq.s32.totalorder %s22, 0
      %p70 = por %p68, %p69
      %s72 = sadd.s32 %s71, 1
      %p75 = scmp.eq.s32.totalorder %s16, 1
      %p76 = scmp.ne.s32.totalorder %s71, %s73
      %p77 = scmp.eq.s32.totalorder %s16, 0
      %p78 = por %p76, %p77
      %p79 = scmp.ne.s32.totalorder %s71, %s73
      %p80 = scmp.eq.s32.totalorder %s21, 1
      %p81 = por %p79, %p80
      %p82 = scmp.ne.s32.totalorder %s73, %s74
      %p83 = scmp.eq.s32.totalorder %s21, 0
      %p84 = por %p82, %p83
      %p85 = scmp.ne.s32.totalorder %s73, %s74
      %p86 = scmp.eq.s32.totalorder %s22, 1
      %p87 = por %p85, %p86
      %p89 = scmp.ne.s32.totalorder %s74, %s88
      %p90 = scmp.eq.s32.totalorder %s22, 0
      %p91 = por %p89, %p90
      %s93 = sadd.s32 %s92, 1
      %p96 = scmp.eq.s32.totalorder %s16, 1
      %p97 = scmp.ne.s32.totalorder %s92, %s94
      %p98 = scmp.eq.s32.totalorder %s16, 0
      %p99 = por %p97, %p98
      %p100 = scmp.ne.s32.totalorder %s92, %s94
      %p101 = scmp.eq.s32.totalorder %s21, 1
      %p102 = por %p100, %p101
      %p103 = scmp.ne.s32.totalorder %s94, %s95
      %p104 = scmp.eq.s32.totalorder %s21, 0
      %p105 = por %p103, %p104
      %p106 = scmp.ne.s32.totalorder %s94, %s95
      %p107 = scmp.eq.s32.totalorder %s22, 1
      %p108 = por %p106, %p107
      %p110 = scmp.ne.s32.totalorder %s95, %s109
      %p111 = scmp.eq.s32.totalorder %s22, 0
      %p112 = por %p110, %p111
      %s114 = sadd.s32 %s113, 1
      %p117 = scmp.eq.s32.totalorder %s16, 1
      %p118 = scmp.ne.s32.totalorder %s113, %s115
      %p119 = scmp.eq.s32.totalorder %s16, 0
      %p120 = por %p118, %p119
      %p121 = scmp.ne.s32.totalorder %s113, %s115
      %p122 = scmp.eq.s32.totalorder %s21, 1
      %p123 = por %p121, %p122
      %p124 = scmp.ne.s32.totalorder %s115, %s116
      %p125 = scmp.eq.s32.totalorder %s21, 0
      %p126 = por %p124, %p125
      %p127 = scmp.ne.s32.totalorder %s115, %s116
      %p128 = scmp.eq.s32.totalorder %s22, 1
      %p129 = por %p127, %p128
      %p131 = scmp.ne.s32.totalorder %s116, %s130
      %p132 = scmp.eq.s32.totalorder %s22, 0
      %p133 = por %p131, %p132
      %s135 = sadd.s32 %s134, 1
      %p138 = scmp.eq.s32.totalorder %s16, 1
      %p139 = scmp.ne.s32.totalorder %s134, %s136
      %p140 = scmp.eq.s32.totalorder %s16, 0
      %p141 = por %p139, %p140
      %p142 = scmp.ne.s32.totalorder %s134, %s136
      %p143 = scmp.eq.s32.totalorder %s21, 1
      %p144 = por %p142, %p143
      %p145 = scmp.ne.s32.totalorder %s136, %s137
      %p146 = scmp.eq.s32.totalorder %s21, 0
      %p147 = por %p145, %p146
      %p148 = scmp.ne.s32.totalorder %s136, %s137
      %p149 = scmp.eq.s32.totalorder %s22, 1
      %p150 = por %p148, %p149
      %p152 = scmp.ne.s32.totalorder %s137, %s151
      %p153 = scmp.eq.s32.totalorder %s22, 0
      %p154 = por %p152, %p153
      %s156 = sadd.s32 %s155, 1
      %p159 = scmp.eq.s32.totalorder %s16, 1
      %p160 = scmp.ne.s32.totalorder %s155, %s157
      %p161 = scmp.eq.s32.totalorder %s16, 0
      %p162 = por %p160, %p161
      %p163 = scmp.ne.s32.totalorder %s155, %s157
      %p164 = scmp.eq.s32.totalorder %s21, 1
      %p165 = por %p163, %p164
      %p166 = scmp.ne.s32.totalorder %s157, %s158
      %p167 = scmp.eq.s32.totalorder %s21, 0
      %p168 = por %p166, %p167
      %p169 = scmp.ne.s32.totalorder %s157, %s158
      %p170 = scmp.eq.s32.totalorder %s22, 1
      %p171 = por %p169, %p170
      %p173 = scmp.ne.s32.totalorder %s158, %s172
      %p174 = scmp.eq.s32.totalorder %s22, 0
      %p175 = por %p173, %p174
      %s176 = ssub.s32 %s16, %s23
      %p177 = scmp.eq.s32.totalorder %s176, 0
      %s179 = sadd.s32 %s178, 1
      %s180 = scalar_select %p177, %s178, %s179
      %p183 = pneg %p177
      %p184 = scmp.eq.s32.totalorder %s16, 1
      %p185 = por %p183, %p184
      %p186 = scmp.ne.s32.totalorder %s178, %s181
      %p187 = scmp.eq.s32.totalorder %s16, 0
      %p188 = por %p186, %p187
      %p189 = scmp.ne.s32.totalorder %s178, %s181
      %p190 = scmp.eq.s32.totalorder %s21, 1
      %p191 = por %p189, %p190
      %p192 = scmp.ne.s32.totalorder %s181, %s182
      %p193 = scmp.eq.s32.totalorder %s21, 0
      %p194 = por %p192, %p193
      %p195 = scmp.ne.s32.totalorder %s181, %s182
      %p196 = scmp.eq.s32.totalorder %s22, 1
      %p197 = por %p195, %p196
      %p199 = scmp.ne.s32.totalorder %s182, %s198
      %p200 = scmp.eq.s32.totalorder %s22, 0
      %p201 = por %p199, %p200
      %p202 = scmp.le.s32.totalorder 1, %s16
      %p203 = scmp.lt.s32.totalorder %s16, 3
      %p204 = pnand %p202, %p203
      %p205 = pneg %p204
      // Predicated region
      $region9: #{tpu_custom_call.1} parent=5 // pred_check
        _
      $region10: #{tpu_custom_call.1} parent=5 // pred_check_branch
        %207 = sbr.rel (%p204) target = $region12
      $region11: #{tpu_custom_call.1} parent=5 // pred_region
        %s208 = ssub.s32 %s16, 1
        // Predicated region
        $region13: #{tpu_custom_call.1} parent=11 // pred_check
          %p209 = pneg %p63
        $region14: #{tpu_custom_call.1} parent=11 // pred_check_branch
          %211 = sbr.rel (%p209) target = $region16
        $region15: #{tpu_custom_call.1} parent=11 // pred_region
          _
        $region16: #{tpu_custom_call.1} parent=11 // pred_fallthru
          _
        // Predicated region
        $region17: #{tpu_custom_call.1} parent=11 // pred_check
          %p212 = pneg %p84
        $region18: #{tpu_custom_call.1} parent=11 // pred_check_branch
          %214 = sbr.rel (%p212) target = $region20
        $region19: #{tpu_custom_call.1} parent=11 // pred_region
          _
        $region20: #{tpu_custom_call.1} parent=11 // pred_fallthru
          _
        // Predicated region
        $region21: #{tpu_custom_call.1} parent=11 // pred_check
          %p215 = pneg %p105
        $region22: #{tpu_custom_call.1} parent=11 // pred_check_branch
          %217 = sbr.rel (%p215) target = $region24
        $region23: #{tpu_custom_call.1} parent=11 // pred_region
          _
        $region24: #{tpu_custom_call.1} parent=11 // pred_fallthru
          _
        // Predicated region
        $region25: #{tpu_custom_call.1} parent=11 // pred_check
          %p218 = pneg %p126
        $region26: #{tpu_custom_call.1} parent=11 // pred_check_branch
          %220 = sbr.rel (%p218) target = $region28
        $region27: #{tpu_custom_call.1} parent=11 // pred_region
          _
        $region28: #{tpu_custom_call.1} parent=11 // pred_fallthru
          _
        // Predicated region
        $region29: #{tpu_custom_call.1} parent=11 // pred_check
          %p221 = pneg %p147
        $region30: #{tpu_custom_call.1} parent=11 // pred_check_branch
          %223 = sbr.rel (%p221) target = $region32
        $region31: #{tpu_custom_call.1} parent=11 // pred_region
          _
        $region32: #{tpu_custom_call.1} parent=11 // pred_fallthru
          _
        // Predicated region
        $region33: #{tpu_custom_call.1} parent=11 // pred_check
          %p224 = pneg %p168
        $region34: #{tpu_custom_call.1} parent=11 // pred_check_branch
          %226 = sbr.rel (%p224) target = $region36
        $region35: #{tpu_custom_call.1} parent=11 // pred_region
          _
        $region36: #{tpu_custom_call.1} parent=11 // pred_fallthru
          _
      $region12: #{tpu_custom_call.1} parent=5 // pred_fallthru
        _
      %p227 = scmp.lt.s32.totalorder %s16, 2
      // Predicated region
      $region37: #{tpu_custom_call.1} parent=5 // pred_check
        %p228 = pneg %p227
      $region38: #{tpu_custom_call.1} parent=5 // pred_check_branch
        %230 = sbr.rel (%p228) target = $region40
      $region39: #{tpu_custom_call.1} parent=5 // pred_region
        // Predicated region
        $region41: #{tpu_custom_call.1} parent=39 // pred_check
          %p231 = pneg %p36
        $region42: #{tpu_custom_call.1} parent=39 // pred_check_branch
          %233 = sbr.rel (%p231) target = $region44
        $region43: #{tpu_custom_call.1} parent=39 // pred_region
          %s234 = smul.u32 16, %s16
          %p235 = scmp.lt.s32.totalorder %s234, 31
          %s236 = scalar_select %p235, %s234, 31
          %s237 = smul.addr %s236, 8
          %s238 = scalar_lea.vmem %s0, %s237
          %s239 = smul.u32 16, %s16
        $region44: #{tpu_custom_call.1} parent=39 // pred_fallthru
          _
      $region40: #{tpu_custom_call.1} parent=5 // pred_fallthru
        _
      %p240 = scmp.le.s32.totalorder 1, %s16
      %p241 = scmp.lt.s32.totalorder %s16, 3
      %p242 = pnand %p240, %p241
      %p243 = pneg %p242
      // Predicated region
      $region45: #{tpu_custom_call.1} parent=5 // pred_check
        _
      $region46: #{tpu_custom_call.1} parent=5 // pred_check_branch
        %245 = sbr.rel (%p242) target = $region48
      $region47: #{tpu_custom_call.1} parent=5 // pred_region
        %s246 = ssub.s32 %s16, 1
        %s247 = smul.u32 16, %s21
        %p248 = scmp.lt.s32.totalorder %s247, 31
        %s249 = scalar_select %p248, %s247, 31
        %s250 = smul.addr %s249, 8
        %s251 = scalar_lea.vmem %s0, %s250
        %p252 = pneg %p42
        %p253 = pneg %p39
        %p254 = pneg %p63
        %p255 = pneg %p60
        %p256 = pneg %p84
        %p257 = pneg %p81
        %p258 = pneg %p105
        %p259 = pneg %p102
        %p260 = pneg %p126
        %p261 = pneg %p123
        %p262 = pneg %p147
        %p263 = pneg %p144
        %p264 = pneg %p168
        %p265 = pneg %p165
        %p266 = pneg %p194
        %p267 = pneg %p191
        %s268 = sand.u32 %s181, 1
        %s269 = scalar_lea.sflag [#allocation3], %s268
        %s270 = sand.u32 %s181, 1
        %s271 = smul.addr %s270, 64
        %s272 = scalar_lea.vmem [#allocation2], %s271
        %s273 = smul.u32 16, %s21
        %p274 = scmp.lt.s32.totalorder %s273, 31
        %s275 = scalar_select %p274, %s273, 31
        %s276 = smul.addr %s275, 8
        %s277 = scalar_lea.vmem %s0, %s276
        %s278 = smul.u32 16, %s21
        %s279 = smul.u32 16, %s21
        %v280 = vld [vmem:[%s277] sm:$0xff]
        %v281 = vld [vmem:[%s277 + $0x8] sm:$0xff]
        %v282 = vld [vmem:[%s277 + $0x10] sm:$0xff]
        %v283 = vld [vmem:[%s277 + $0x18] sm:$0xff]
        %v284 = vld [vmem:[%s277 + $0x20] sm:$0xff]
        %v285 = vld [vmem:[%s277 + $0x28] sm:$0xff]
        %v286 = vld [vmem:[%s277 + $0x30] sm:$0xff]
        %v287 = vld [vmem:[%s277 + $0x38] sm:$0xff]
        %v288 = vld [vmem:[%s277 + $0x40] sm:$0xff]
        %v289 = vld [vmem:[%s277 + $0x48] sm:$0xff]
        %v290 = vld [vmem:[%s277 + $0x50] sm:$0xff]
        %v291 = vld [vmem:[%s277 + $0x58] sm:$0xff]
        %v292 = vld [vmem:[%s277 + $0x60] sm:$0xff]
        %v293 = vld [vmem:[%s277 + $0x68] sm:$0xff]
        %v294 = vld [vmem:[%s277 + $0x70] sm:$0xff]
        %v295 = vld [vmem:[%s277 + $0x78] sm:$0xff]
        %v296 = vld [vmem:[%s1] sm:$0xff]
        %v297 = vld [vmem:[%s1 + $0x8] sm:$0xff]
        %v298 = vld [vmem:[%s1 + $0x10] sm:$0xff]
        %v299 = vld [vmem:[%s1 + $0x18] sm:$0xff]
        %v300 = vld [vmem:[%s1 + $0x20] sm:$0xff]
        %v301 = vld [vmem:[%s1 + $0x28] sm:$0xff]
        %v302 = vld [vmem:[%s1 + $0x30] sm:$0xff]
        %v303 = vld [vmem:[%s1 + $0x38] sm:$0x3f]
        %v304 = vld [vmem:[%s2] sm:$0x1]
        %v306 = vlaneseq
        %v307 = vshrl.u32 %v306, 7
        %v308 = vsub.s32 0, %v307
        %v309 = vrot.slane %v304, %v308
        %vm311 = vcmask 506880
        %v313 = vsel %vm311, %v280, 0
        %v316 = vsel %vm311, %v281, 0
        %v319 = vsel %vm311, %v282, 0
        %v322 = vsel %vm311, %v283, 0
        %v325 = vsel %vm311, %v284, 0
        %v328 = vsel %vm311, %v285, 0
        %v331 = vsel %vm311, %v286, 0
        %v334 = vsel %vm311, %v287, 0
        %v337 = vsel %vm311, %v288, 0
        %v340 = vsel %vm311, %v289, 0
        %v343 = vsel %vm311, %v290, 0
        %v346 = vsel %vm311, %v291, 0
        %v349 = vsel %vm311, %v292, 0
        %v352 = vsel %vm311, %v293, 0
        %v355 = vsel %vm311, %v294, 0
        %v358 = vsel %vm311, %v295, 0
        %vm360 = vcmask 1045504
        %v362 = vsel %vm360, %v303, 0
        %364 = vmatprep.subr.mxu0 0.0
        %365 = vmatpush1.msra.mxu0 %v296
        %366 = vmatprep.subr.mxu0 0.0
        %367 = vmatpush1.msra.mxu0 %v297
        %368 = vmatprep.subr.mxu0 0.0
        %369 = vmatpush1.msra.mxu0 %v298
        %370 = vmatprep.subr.mxu0 0.0
        %371 = vmatpush1.msra.mxu0 %v299
        %372 = vmatprep.subr.mxu0 0.0
        %373 = vmatpush1.msra.mxu0 %v300
        %374 = vmatprep.subr.mxu0 0.0
        %375 = vmatpush1.msra.mxu0 %v301
        %376 = vmatprep.subr.mxu0 0.0
        %377 = vmatpush1.msra.mxu0 %v302
        %378 = vmatprep.subr.mxu0 0.0
        %379 = vmatpush1.msra.mxu0 %v362
        %380 = vmatprep.subr.mxu0 0.0
        %381 = vmatpush1.msra.mxu0 0.0
        %382 = vmatprep.subr.mxu0 0.0
        %383 = vmatpush1.msra.mxu0 0.0
        %384 = vmatprep.subr.mxu0 0.0
        %385 = vmatpush1.msra.mxu0 0.0
        %386 = vmatprep.subr.mxu0 0.0
        %387 = vmatpush1.msra.mxu0 0.0
        %388 = vmatprep.subr.mxu0 0.0
        %389 = vmatpush1.msra.mxu0 0.0
        %390 = vmatprep.subr.mxu0 0.0
        %391 = vmatpush1.msra.mxu0 0.0
        %392 = vmatprep.subr.mxu0 0.0
        %393 = vmatpush1.msra.mxu0 0.0
        %394 = vmatprep.subr.mxu0 0.0
        %395 = vmatpush1.msra.mxu0 0.0
        %396 = vmatprep.subr.mxu0 0.0
        %397 = vmatpush1.msra.mxu0 0.0
        %398 = vmatprep.subr.mxu0 0.0
        %399 = vmatpush1.msra.mxu0 0.0
        %400 = vmatprep.subr.mxu0 0.0
        %401 = vmatpush1.msra.mxu0 0.0
        %402 = vmatprep.subr.mxu0 0.0
        %403 = vmatpush1.msra.mxu0 0.0
        %404 = vmatprep.subr.mxu0 0.0
        %405 = vmatpush1.msra.mxu0 0.0
        %406 = vmatprep.subr.mxu0 0.0
        %407 = vmatpush1.msra.mxu0 0.0
        %408 = vmatprep.subr.mxu0 0.0
        %409 = vmatpush1.msra.mxu0 0.0
        %410 = vmatprep.subr.mxu0 0.0
        %411 = vmatpush1.msra.mxu0 0.0
        %412 = vmatprep.subr.mxu0 0.0
        %413 = vmatpush1.msra.mxu0 0.0
        %414 = vmatprep.subr.mxu0 0.0
        %415 = vmatpush1.msra.mxu0 0.0
        %416 = vmatprep.subr.mxu0 0.0
        %417 = vmatpush1.msra.mxu0 0.0
        %418 = vmatprep.subr.mxu0 0.0
        %419 = vmatpush1.msra.mxu0 0.0
        %420 = vmatprep.subr.mxu0 0.0
        %421 = vmatpush1.msra.mxu0 0.0
        %422 = vmatprep.subr.mxu0 0.0
        %423 = vmatpush1.msra.mxu0 0.0
        %424 = vmatprep.subr.mxu0 0.0
        %425 = vmatpush1.msra.mxu0 0.0
        %426 = vmatprep.subr.mxu0 0.0
        %427 = vmatpush1.msra.mxu0 0.0
        %428 = vmatprep.mubr.f32.mxu0 0.0
        %429 = vmatmul.mubr.f32.gmra.mrb[0].mxu0 %v313
        %v430 = vpop.f32.mrb[0].mxu0
        %v431 = vadd.f32 %v309, %v430
        %v432 = vpop.f32.mrb[0].mxu0
        %433 = vmatprep.mubr.f32.mxu0 0.0
        %434 = vmatmul.mubr.f32.gmra.mrb[0].mxu0 %v316
        %v435 = vpop.f32.mrb[0].mxu0
        %v436 = vadd.f32 %v309, %v435
        %v437 = vpop.f32.mrb[0].mxu0
        %438 = vmatprep.mubr.f32.mxu0 0.0
        %439 = vmatmul.mubr.f32.gmra.mrb[0].mxu0 %v319
        %v440 = vpop.f32.mrb[0].mxu0
        %v441 = vadd.f32 %v309, %v440
        %v442 = vpop.f32.mrb[0].mxu0
        %443 = vmatprep.mubr.f32.mxu0 0.0
        %444 = vmatmul.mubr.f32.gmra.mrb[0].mxu0 %v322
        %v445 = vpop.f32.mrb[0].mxu0
        %v446 = vadd.f32 %v309, %v445
        %v447 = vpop.f32.mrb[0].mxu0
        %448 = vmatprep.mubr.f32.mxu0 0.0
        %449 = vmatmul.mubr.f32.gmra.mrb[0].mxu0 %v325
        %v450 = vpop.f32.mrb[0].mxu0
        %v451 = vadd.f32 %v309, %v450
        %v452 = vpop.f32.mrb[0].mxu0
        %453 = vmatprep.mubr.f32.mxu0 0.0
        %454 = vmatmul.mubr.f32.gmra.mrb[0].mxu0 %v328
        %v455 = vpop.f32.mrb[0].mxu0
        %v456 = vadd.f32 %v309, %v455
        %v457 = vpop.f32.mrb[0].mxu0
        %458 = vmatprep.mubr.f32.mxu0 0.0
        %459 = vmatmul.mubr.f32.gmra.mrb[0].mxu0 %v331
        %v460 = vpop.f32.mrb[0].mxu0
        %v461 = vadd.f32 %v309, %v460
        %v462 = vpop.f32.mrb[0].mxu0
        %463 = vmatprep.mubr.f32.mxu0 0.0
        %464 = vmatmul.mubr.f32.gmra.mrb[0].mxu0 %v334
        %v465 = vpop.f32.mrb[0].mxu0
        %v466 = vadd.f32 %v309, %v465
        %v467 = vpop.f32.mrb[0].mxu0
        %468 = vmatprep.mubr.f32.mxu0 0.0
        %469 = vmatmul.mubr.f32.gmra.mrb[0].mxu0 %v337
        %v470 = vpop.f32.mrb[0].mxu0
        %v471 = vadd.f32 %v309, %v470
        %v472 = vpop.f32.mrb[0].mxu0
        %473 = vmatprep.mubr.f32.mxu0 0.0
        %474 = vmatmul.mubr.f32.gmra.mrb[0].mxu0 %v340
        %v475 = vpop.f32.mrb[0].mxu0
        %v476 = vadd.f32 %v309, %v475
        %v477 = vpop.f32.mrb[0].mxu0
        %478 = vmatprep.mubr.f32.mxu0 0.0
        %479 = vmatmul.mubr.f32.gmra.mrb[0].mxu0 %v343
        %v480 = vpop.f32.mrb[0].mxu0
        %v481 = vadd.f32 %v309, %v480
        %v482 = vpop.f32.mrb[0].mxu0
        %483 = vmatprep.mubr.f32.mxu0 0.0
        %484 = vmatmul.mubr.f32.gmra.mrb[0].mxu0 %v346
        %v485 = vpop.f32.mrb[0].mxu0
        %v486 = vadd.f32 %v309, %v485
        %v487 = vpop.f32.mrb[0].mxu0
        %488 = vmatprep.mubr.f32.mxu0 0.0
        %489 = vmatmul.mubr.f32.gmra.mrb[0].mxu0 %v349
        %v490 = vpop.f32.mrb[0].mxu0
        %v491 = vadd.f32 %v309, %v490
        %v492 = vpop.f32.mrb[0].mxu0
        %493 = vmatprep.mubr.f32.mxu0 0.0
        %494 = vmatmul.mubr.f32.gmra.mrb[0].mxu0 %v352
        %v495 = vpop.f32.mrb[0].mxu0
        %v496 = vadd.f32 %v309, %v495
        %v497 = vpop.f32.mrb[0].mxu0
        %498 = vmatprep.mubr.f32.mxu0 0.0
        %499 = vmatmul.mubr.f32.gmra.mrb[0].mxu0 %v355
        %v500 = vpop.f32.mrb[0].mxu0
        %v501 = vadd.f32 %v309, %v500
        %v502 = vpop.f32.mrb[0].mxu0
        %503 = vmatprep.mubr.f32.mxu0 0.0
        %504 = vmatmul.mubr.f32.gmra.mrb[0].mxu0 %v358
        %v505 = vpop.f32.mrb[0].mxu0
        %v506 = vadd.f32 %v309, %v505
        %v507 = vpop.f32.mrb[0].mxu0
        %508 = vdwg.mxu0
        %v509 = vmax.f32 %v431, 0.0
        %v510 = vmax.f32 %v436, 0.0
        %v511 = vmax.f32 %v441, 0.0
        %v512 = vmax.f32 %v446, 0.0
        %v513 = vmax.f32 %v451, 0.0
        %v514 = vmax.f32 %v456, 0.0
        %v515 = vmax.f32 %v461, 0.0
        %v516 = vmax.f32 %v466, 0.0
        %v517 = vmax.f32 %v471, 0.0
        %v518 = vmax.f32 %v476, 0.0
        %v519 = vmax.f32 %v481, 0.0
        %v520 = vmax.f32 %v486, 0.0
        %v521 = vmax.f32 %v491, 0.0
        %v522 = vmax.f32 %v496, 0.0
        %v523 = vmax.f32 %v501, 0.0
        %v524 = vmax.f32 %v506, 0.0
        %v525 = vld [vmem:[%s3] sm:$0xff]
        %v526 = vld [vmem:[%s3 + $0x8] sm:$0xff]
        %v527 = vld [vmem:[%s3 + $0x10] sm:$0xff]
        %v528 = vld [vmem:[%s3 + $0x18] sm:$0xff]
        %v529 = vld [vmem:[%s3 + $0x20] sm:$0xff]
        %v530 = vld [vmem:[%s3 + $0x28] sm:$0xff]
        %v531 = vld [vmem:[%s3 + $0x30] sm:$0xff]
        %v532 = vld [vmem:[%s3 + $0x38] sm:$0xff]
        %v533 = vld [vmem:[%s3 + $0x40] sm:$0xff]
        %v534 = vld [vmem:[%s3 + $0x48] sm:$0xff]
        %v535 = vld [vmem:[%s3 + $0x50] sm:$0xff]
        %v536 = vld [vmem:[%s3 + $0x58] sm:$0xff]
        %v537 = vld [vmem:[%s3 + $0x60] sm:$0xff]
        %v538 = vld [vmem:[%s3 + $0x68] sm:$0xff]
        %v539 = vld [vmem:[%s3 + $0x70] sm:$0xff]
        %v540 = vld [vmem:[%s3 + $0x78] sm:$0xff]
        %v541 = vld [vmem:[%s4] sm:$0x1]
        %v543 = vlaneseq
        %v544 = vshrl.u32 %v543, 7
        %v545 = vsub.s32 0, %v544
        %v546 = vrot.slane %v541, %v545
        %548 = vmatprep.subr.mxu0 0.0
        %549 = vmatpush1.msra.mxu0 %v525
        %550 = vmatprep.subr.mxu0 0.0
        %551 = vmatpush1.msra.mxu0 %v526
        %552 = vmatprep.subr.mxu0 0.0
        %553 = vmatpush1.msra.mxu0 %v527
        %554 = vmatprep.subr.mxu0 0.0
        %555 = vmatpush1.msra.mxu0 %v528
        %556 = vmatprep.subr.mxu0 0.0
        %557 = vmatpush1.msra.mxu0 %v529
        %558 = vmatprep.subr.mxu0 0.0
        %559 = vmatpush1.msra.mxu0 %v530
        %560 = vmatprep.subr.mxu0 0.0
        %561 = vmatpush1.msra.mxu0 %v531
        %562 = vmatprep.subr.mxu0 0.0
        %563 = vmatpush1.msra.mxu0 %v532
        %564 = vmatprep.subr.mxu0 0.0
        %565 = vmatpush1.msra.mxu0 %v533
        %566 = vmatprep.subr.mxu0 0.0
        %567 = vmatpush1.msra.mxu0 %v534
        %568 = vmatprep.subr.mxu0 0.0
        %569 = vmatpush1.msra.mxu0 %v535
        %570 = vmatprep.subr.mxu0 0.0
        %571 = vmatpush1.msra.mxu0 %v536
        %572 = vmatprep.subr.mxu0 0.0
        %573 = vmatpush1.msra.mxu0 %v537
        %574 = vmatprep.subr.mxu0 0.0
        %575 = vmatpush1.msra.mxu0 %v538
        %576 = vmatprep.subr.mxu0 0.0
        %577 = vmatpush1.msra.mxu0 %v539
        %578 = vmatprep.subr.mxu0 0.0
        %579 = vmatpush1.msra.mxu0 %v540
        %580 = vmatprep.subr.mxu0 0.0
        %581 = vmatpush1.msra.mxu0 0.0
        %582 = vmatprep.subr.mxu0 0.0
        %583 = vmatpush1.msra.mxu0 0.0
        %584 = vmatprep.subr.mxu0 0.0
        %585 = vmatpush1.msra.mxu0 0.0
        %586 = vmatprep.subr.mxu0 0.0
        %587 = vmatpush1.msra.mxu0 0.0
        %588 = vmatprep.subr.mxu0 0.0
        %589 = vmatpush1.msra.mxu0 0.0
        %590 = vmatprep.subr.mxu0 0.0
        %591 = vmatpush1.msra.mxu0 0.0
        %592 = vmatprep.subr.mxu0 0.0
        %593 = vmatpush1.msra.mxu0 0.0
        %594 = vmatprep.subr.mxu0 0.0
        %595 = vmatpush1.msra.mxu0 0.0
        %596 = vmatprep.subr.mxu0 0.0
        %597 = vmatpush1.msra.mxu0 0.0
        %598 = vmatprep.subr.mxu0 0.0
        %599 = vmatpush1.msra.mxu0 0.0
        %600 = vmatprep.subr.mxu0 0.0
        %601 = vmatpush1.msra.mxu0 0.0
        %602 = vmatprep.subr.mxu0 0.0
        %603 = vmatpush1.msra.mxu0 0.0
        %604 = vmatprep.subr.mxu0 0.0
        %605 = vmatpush1.msra.mxu0 0.0
        %606 = vmatprep.subr.mxu0 0.0
        %607 = vmatpush1.msra.mxu0 0.0
        %608 = vmatprep.subr.mxu0 0.0
        %609 = vmatpush1.msra.mxu0 0.0
        %610 = vmatprep.subr.mxu0 0.0
        %611 = vmatpush1.msra.mxu0 0.0
        %612 = vmatprep.mubr.f32.mxu0 0.0
        %613 = vmatmul.mubr.f32.gmra.mrb[0].mxu0 %v509
        %v614 = vpop.f32.mrb[0].mxu0
        %v615 = vadd.f32 %v546, %v614
        %v616 = vpop.f32.mrb[0].mxu0
        %617 = vmatprep.mubr.f32.mxu0 0.0
        %618 = vmatmul.mubr.f32.gmra.mrb[0].mxu0 %v510
        %v619 = vpop.f32.mrb[0].mxu0
        %v620 = vadd.f32 %v546, %v619
        %v621 = vpop.f32.mrb[0].mxu0
        %622 = vmatprep.mubr.f32.mxu0 0.0
        %623 = vmatmul.mubr.f32.gmra.mrb[0].mxu0 %v511
        %v624 = vpop.f32.mrb[0].mxu0
        %v625 = vadd.f32 %v546, %v624
        %v626 = vpop.f32.mrb[0].mxu0
        %627 = vmatprep.mubr.f32.mxu0 0.0
        %628 = vmatmul.mubr.f32.gmra.mrb[0].mxu0 %v512
        %v629 = vpop.f32.mrb[0].mxu0
        %v630 = vadd.f32 %v546, %v629
        %v631 = vpop.f32.mrb[0].mxu0
        %632 = vmatprep.mubr.f32.mxu0 0.0
        %633 = vmatmul.mubr.f32.gmra.mrb[0].mxu0 %v513
        %v634 = vpop.f32.mrb[0].mxu0
        %v635 = vadd.f32 %v546, %v634
        %v636 = vpop.f32.mrb[0].mxu0
        %637 = vmatprep.mubr.f32.mxu0 0.0
        %638 = vmatmul.mubr.f32.gmra.mrb[0].mxu0 %v514
        %v639 = vpop.f32.mrb[0].mxu0
        %v640 = vadd.f32 %v546, %v639
        %v641 = vpop.f32.mrb[0].mxu0
        %642 = vmatprep.mubr.f32.mxu0 0.0
        %643 = vmatmul.mubr.f32.gmra.mrb[0].mxu0 %v515
        %v644 = vpop.f32.mrb[0].mxu0
        %v645 = vadd.f32 %v546, %v644
        %v646 = vpop.f32.mrb[0].mxu0
        %647 = vmatprep.mubr.f32.mxu0 0.0
        %648 = vmatmul.mubr.f32.gmra.mrb[0].mxu0 %v516
        %v649 = vpop.f32.mrb[0].mxu0
        %v650 = vadd.f32 %v546, %v649
        %v651 = vpop.f32.mrb[0].mxu0
        %652 = vmatprep.mubr.f32.mxu0 0.0
        %653 = vmatmul.mubr.f32.gmra.mrb[0].mxu0 %v517
        %v654 = vpop.f32.mrb[0].mxu0
        %v655 = vadd.f32 %v546, %v654
        %v656 = vpop.f32.mrb[0].mxu0
        %657 = vmatprep.mubr.f32.mxu0 0.0
        %658 = vmatmul.mubr.f32.gmra.mrb[0].mxu0 %v518
        %v659 = vpop.f32.mrb[0].mxu0
        %v660 = vadd.f32 %v546, %v659
        %v661 = vpop.f32.mrb[0].mxu0
        %662 = vmatprep.mubr.f32.mxu0 0.0
        %663 = vmatmul.mubr.f32.gmra.mrb[0].mxu0 %v519
        %v664 = vpop.f32.mrb[0].mxu0
        %v665 = vadd.f32 %v546, %v664
        %v666 = vpop.f32.mrb[0].mxu0
        %667 = vmatprep.mubr.f32.mxu0 0.0
        %668 = vmatmul.mubr.f32.gmra.mrb[0].mxu0 %v520
        %v669 = vpop.f32.mrb[0].mxu0
        %v670 = vadd.f32 %v546, %v669
        %v671 = vpop.f32.mrb[0].mxu0
        %672 = vmatprep.mubr.f32.mxu0 0.0
        %673 = vmatmul.mubr.f32.gmra.mrb[0].mxu0 %v521
        %v674 = vpop.f32.mrb[0].mxu0
        %v675 = vadd.f32 %v546, %v674
        %v676 = vpop.f32.mrb[0].mxu0
        %677 = vmatprep.mubr.f32.mxu0 0.0
        %678 = vmatmul.mubr.f32.gmra.mrb[0].mxu0 %v522
        %v679 = vpop.f32.mrb[0].mxu0
        %v680 = vadd.f32 %v546, %v679
        %v681 = vpop.f32.mrb[0].mxu0
        %682 = vmatprep.mubr.f32.mxu0 0.0
        %683 = vmatmul.mubr.f32.gmra.mrb[0].mxu0 %v523
        %v684 = vpop.f32.mrb[0].mxu0
        %v685 = vadd.f32 %v546, %v684
        %v686 = vpop.f32.mrb[0].mxu0
        %687 = vmatprep.mubr.f32.mxu0 0.0
        %688 = vmatmul.mubr.f32.gmra.mrb[0].mxu0 %v524
        %v689 = vpop.f32.mrb[0].mxu0
        %v690 = vadd.f32 %v546, %v689
        %v691 = vpop.f32.mrb[0].mxu0
        %692 = vdwg.mxu0
        %v693 = vmax.f32 %v615, 0.0
        %v694 = vmax.f32 %v620, 0.0
        %v695 = vmax.f32 %v625, 0.0
        %v696 = vmax.f32 %v630, 0.0
        %v697 = vmax.f32 %v635, 0.0
        %v698 = vmax.f32 %v640, 0.0
        %v699 = vmax.f32 %v645, 0.0
        %v700 = vmax.f32 %v650, 0.0
        %v701 = vmax.f32 %v655, 0.0
        %v702 = vmax.f32 %v660, 0.0
        %v703 = vmax.f32 %v665, 0.0
        %v704 = vmax.f32 %v670, 0.0
        %v705 = vmax.f32 %v675, 0.0
        %v706 = vmax.f32 %v680, 0.0
        %v707 = vmax.f32 %v685, 0.0
        %v708 = vmax.f32 %v690, 0.0
        %v709 = vld [vmem:[%s5] sm:$0xff]
        %v710 = vld [vmem:[%s5 + $0x8] sm:$0xff]
        %v711 = vld [vmem:[%s5 + $0x10] sm:$0xff]
        %v712 = vld [vmem:[%s5 + $0x18] sm:$0xff]
        %v713 = vld [vmem:[%s5 + $0x20] sm:$0xff]
        %v714 = vld [vmem:[%s5 + $0x28] sm:$0xff]
        %v715 = vld [vmem:[%s5 + $0x30] sm:$0xff]
        %v716 = vld [vmem:[%s5 + $0x38] sm:$0xff]
        %v717 = vld [vmem:[%s5 + $0x40] sm:$0xff]
        %v718 = vld [vmem:[%s5 + $0x48] sm:$0xff]
        %v719 = vld [vmem:[%s5 + $0x50] sm:$0xff]
        %v720 = vld [vmem:[%s5 + $0x58] sm:$0xff]
        %v721 = vld [vmem:[%s5 + $0x60] sm:$0xff]
        %v722 = vld [vmem:[%s5 + $0x68] sm:$0xff]
        %v723 = vld [vmem:[%s5 + $0x70] sm:$0xff]
        %v724 = vld [vmem:[%s5 + $0x78] sm:$0xff]
        %v725 = vld [vmem:[%s6] sm:$0x1]
        %v727 = vlaneseq
        %v728 = vshrl.u32 %v727, 7
        %v729 = vsub.s32 0, %v728
        %v730 = vrot.slane %v725, %v729
        %732 = vmatprep.subr.mxu0 0.0
        %733 = vmatpush1.msra.mxu0 %v709
        %734 = vmatprep.subr.mxu0 0.0
        %735 = vmatpush1.msra.mxu0 %v710
        %736 = vmatprep.subr.mxu0 0.0
        %737 = vmatpush1.msra.mxu0 %v711
        %738 = vmatprep.subr.mxu0 0.0
        %739 = vmatpush1.msra.mxu0 %v712
        %740 = vmatprep.subr.mxu0 0.0
        %741 = vmatpush1.msra.mxu0 %v713
        %742 = vmatprep.subr.mxu0 0.0
        %743 = vmatpush1.msra.mxu0 %v714
        %744 = vmatprep.subr.mxu0 0.0
        %745 = vmatpush1.msra.mxu0 %v715
        %746 = vmatprep.subr.mxu0 0.0
        %747 = vmatpush1.msra.mxu0 %v716
        %748 = vmatprep.subr.mxu0 0.0
        %749 = vmatpush1.msra.mxu0 %v717
        %750 = vmatprep.subr.mxu0 0.0
        %751 = vmatpush1.msra.mxu0 %v718
        %752 = vmatprep.subr.mxu0 0.0
        %753 = vmatpush1.msra.mxu0 %v719
        %754 = vmatprep.subr.mxu0 0.0
        %755 = vmatpush1.msra.mxu0 %v720
        %756 = vmatprep.subr.mxu0 0.0
        %757 = vmatpush1.msra.mxu0 %v721
        %758 = vmatprep.subr.mxu0 0.0
        %759 = vmatpush1.msra.mxu0 %v722
        %760 = vmatprep.subr.mxu0 0.0
        %761 = vmatpush1.msra.mxu0 %v723
        %762 = vmatprep.subr.mxu0 0.0
        %763 = vmatpush1.msra.mxu0 %v724
        %764 = vmatprep.subr.mxu0 0.0
        %765 = vmatpush1.msra.mxu0 0.0
        %766 = vmatprep.subr.mxu0 0.0
        %767 = vmatpush1.msra.mxu0 0.0
        %768 = vmatprep.subr.mxu0 0.0
        %769 = vmatpush1.msra.mxu0 0.0
        %770 = vmatprep.subr.mxu0 0.0
        %771 = vmatpush1.msra.mxu0 0.0
        %772 = vmatprep.subr.mxu0 0.0
        %773 = vmatpush1.msra.mxu0 0.0
        %774 = vmatprep.subr.mxu0 0.0
        %775 = vmatpush1.msra.mxu0 0.0
        %776 = vmatprep.subr.mxu0 0.0
        %777 = vmatpush1.msra.mxu0 0.0
        %778 = vmatprep.subr.mxu0 0.0
        %779 = vmatpush1.msra.mxu0 0.0
        %780 = vmatprep.subr.mxu0 0.0
        %781 = vmatpush1.msra.mxu0 0.0
        %782 = vmatprep.subr.mxu0 0.0
        %783 = vmatpush1.msra.mxu0 0.0
        %784 = vmatprep.subr.mxu0 0.0
        %785 = vmatpush1.msra.mxu0 0.0
        %786 = vmatprep.subr.mxu0 0.0
        %787 = vmatpush1.msra.mxu0 0.0
        %788 = vmatprep.subr.mxu0 0.0
        %789 = vmatpush1.msra.mxu0 0.0
        %790 = vmatprep.subr.mxu0 0.0
        %791 = vmatpush1.msra.mxu0 0.0
        %792 = vmatprep.subr.mxu0 0.0
        %793 = vmatpush1.msra.mxu0 0.0
        %794 = vmatprep.subr.mxu0 0.0
        %795 = vmatpush1.msra.mxu0 0.0
        %796 = vmatprep.mubr.f32.mxu0 0.0
        %797 = vmatmul.mubr.f32.gmra.mrb[0].mxu0 %v693
        %v798 = vpop.f32.mrb[0].mxu0
        %v799 = vadd.f32 %v730, %v798
        %v800 = vpop.f32.mrb[0].mxu0
        %801 = vmatprep.mubr.f32.mxu0 0.0
        %802 = vmatmul.mubr.f32.gmra.mrb[0].mxu0 %v694
        %v803 = vpop.f32.mrb[0].mxu0
        %v804 = vadd.f32 %v730, %v803
        %v805 = vpop.f32.mrb[0].mxu0
        %806 = vmatprep.mubr.f32.mxu0 0.0
        %807 = vmatmul.mubr.f32.gmra.mrb[0].mxu0 %v695
        %v808 = vpop.f32.mrb[0].mxu0
        %v809 = vadd.f32 %v730, %v808
        %v810 = vpop.f32.mrb[0].mxu0
        %811 = vmatprep.mubr.f32.mxu0 0.0
        %812 = vmatmul.mubr.f32.gmra.mrb[0].mxu0 %v696
        %v813 = vpop.f32.mrb[0].mxu0
        %v814 = vadd.f32 %v730, %v813
        %v815 = vpop.f32.mrb[0].mxu0
        %816 = vmatprep.mubr.f32.mxu0 0.0
        %817 = vmatmul.mubr.f32.gmra.mrb[0].mxu0 %v697
        %v818 = vpop.f32.mrb[0].mxu0
        %v819 = vadd.f32 %v730, %v818
        %v820 = vpop.f32.mrb[0].mxu0
        %821 = vmatprep.mubr.f32.mxu0 0.0
        %822 = vmatmul.mubr.f32.gmra.mrb[0].mxu0 %v698
        %v823 = vpop.f32.mrb[0].mxu0
        %v824 = vadd.f32 %v730, %v823
        %v825 = vpop.f32.mrb[0].mxu0
        %826 = vmatprep.mubr.f32.mxu0 0.0
        %827 = vmatmul.mubr.f32.gmra.mrb[0].mxu0 %v699
        %v828 = vpop.f32.mrb[0].mxu0
        %v829 = vadd.f32 %v730, %v828
        %v830 = vpop.f32.mrb[0].mxu0
        %831 = vmatprep.mubr.f32.mxu0 0.0
        %832 = vmatmul.mubr.f32.gmra.mrb[0].mxu0 %v700
        %v833 = vpop.f32.mrb[0].mxu0
        %v834 = vadd.f32 %v730, %v833
        %v835 = vpop.f32.mrb[0].mxu0
        %836 = vmatprep.mubr.f32.mxu0 0.0
        %837 = vmatmul.mubr.f32.gmra.mrb[0].mxu0 %v701
        %v838 = vpop.f32.mrb[0].mxu0
        %v839 = vadd.f32 %v730, %v838
        %v840 = vpop.f32.mrb[0].mxu0
        %841 = vmatprep.mubr.f32.mxu0 0.0
        %842 = vmatmul.mubr.f32.gmra.mrb[0].mxu0 %v702
        %v843 = vpop.f32.mrb[0].mxu0
        %v844 = vadd.f32 %v730, %v843
        %v845 = vpop.f32.mrb[0].mxu0
        %846 = vmatprep.mubr.f32.mxu0 0.0
        %847 = vmatmul.mubr.f32.gmra.mrb[0].mxu0 %v703
        %v848 = vpop.f32.mrb[0].mxu0
        %v849 = vadd.f32 %v730, %v848
        %v850 = vpop.f32.mrb[0].mxu0
        %851 = vmatprep.mubr.f32.mxu0 0.0
        %852 = vmatmul.mubr.f32.gmra.mrb[0].mxu0 %v704
        %v853 = vpop.f32.mrb[0].mxu0
        %v854 = vadd.f32 %v730, %v853
        %v855 = vpop.f32.mrb[0].mxu0
        %856 = vmatprep.mubr.f32.mxu0 0.0
        %857 = vmatmul.mubr.f32.gmra.mrb[0].mxu0 %v705
        %v858 = vpop.f32.mrb[0].mxu0
        %v859 = vadd.f32 %v730, %v858
        %v860 = vpop.f32.mrb[0].mxu0
        %861 = vmatprep.mubr.f32.mxu0 0.0
        %862 = vmatmul.mubr.f32.gmra.mrb[0].mxu0 %v706
        %v863 = vpop.f32.mrb[0].mxu0
        %v864 = vadd.f32 %v730, %v863
        %v865 = vpop.f32.mrb[0].mxu0
        %866 = vmatprep.mubr.f32.mxu0 0.0
        %867 = vmatmul.mubr.f32.gmra.mrb[0].mxu0 %v707
        %v868 = vpop.f32.mrb[0].mxu0
        %v869 = vadd.f32 %v730, %v868
        %v870 = vpop.f32.mrb[0].mxu0
        %871 = vmatprep.mubr.f32.mxu0 0.0
        %872 = vmatmul.mubr.f32.gmra.mrb[0].mxu0 %v708
        %v873 = vpop.f32.mrb[0].mxu0
        %v874 = vadd.f32 %v730, %v873
        %v875 = vpop.f32.mrb[0].mxu0
        %876 = vdwg.mxu0
        %893 = vrot.lane.b32.xlu0 %v799, 127
        %v894 = vpop.permute.xlu0 %893
        %895 = vrot.lane.b32.xlu0 %v804, 127
        %v896 = vpop.permute.xlu0 %895
        %897 = vrot.lane.b32.xlu0 %v809, 127
        %v898 = vpop.permute.xlu0 %897
        %899 = vrot.lane.b32.xlu0 %v814, 127
        %v900 = vpop.permute.xlu0 %899
        %901 = vrot.lane.b32.xlu0 %v819, 127
        %v902 = vpop.permute.xlu0 %901
        %903 = vrot.lane.b32.xlu0 %v824, 127
        %v904 = vpop.permute.xlu0 %903
        %905 = vrot.lane.b32.xlu0 %v829, 127
        %v906 = vpop.permute.xlu0 %905
        %907 = vrot.lane.b32.xlu0 %v834, 127
        %v908 = vpop.permute.xlu0 %907
        %909 = vrot.lane.b32.xlu0 %v839, 127
        %v910 = vpop.permute.xlu0 %909
        %911 = vrot.lane.b32.xlu0 %v844, 127
        %v912 = vpop.permute.xlu0 %911
        %913 = vrot.lane.b32.xlu0 %v849, 127
        %v914 = vpop.permute.xlu0 %913
        %915 = vrot.lane.b32.xlu0 %v854, 127
        %v916 = vpop.permute.xlu0 %915
        %917 = vrot.lane.b32.xlu0 %v859, 127
        %v918 = vpop.permute.xlu0 %917
        %919 = vrot.lane.b32.xlu0 %v864, 127
        %v920 = vpop.permute.xlu0 %919
        %921 = vrot.lane.b32.xlu0 %v869, 127
        %v922 = vpop.permute.xlu0 %921
        %923 = vrot.lane.b32.xlu0 %v874, 127
        %v924 = vpop.permute.xlu0 %923
        %v941 = vmax.f32 %v799, %v894
        %v942 = vmax.f32 %v804, %v896
        %v943 = vmax.f32 %v809, %v898
        %v944 = vmax.f32 %v814, %v900
        %v945 = vmax.f32 %v819, %v902
        %v946 = vmax.f32 %v824, %v904
        %v947 = vmax.f32 %v829, %v906
        %v948 = vmax.f32 %v834, %v908
        %v949 = vmax.f32 %v839, %v910
        %v950 = vmax.f32 %v844, %v912
        %v951 = vmax.f32 %v849, %v914
        %v952 = vmax.f32 %v854, %v916
        %v953 = vmax.f32 %v859, %v918
        %v954 = vmax.f32 %v864, %v920
        %v955 = vmax.f32 %v869, %v922
        %v956 = vmax.f32 %v874, %v924
        %957 = vrot.lane.b32.xlu0 %v799, 126
        %v958 = vpop.permute.xlu0 %957
        %959 = vrot.lane.b32.xlu0 %v804, 126
        %v960 = vpop.permute.xlu0 %959
        %961 = vrot.lane.b32.xlu0 %v809, 126
        %v962 = vpop.permute.xlu0 %961
        %963 = vrot.lane.b32.xlu0 %v814, 126
        %v964 = vpop.permute.xlu0 %963
        %965 = vrot.lane.b32.xlu0 %v819, 126
        %v966 = vpop.permute.xlu0 %965
        %967 = vrot.lane.b32.xlu0 %v824, 126
        %v968 = vpop.permute.xlu0 %967
        %969 = vrot.lane.b32.xlu0 %v829, 126
        %v970 = vpop.permute.xlu0 %969
        %971 = vrot.lane.b32.xlu0 %v834, 126
        %v972 = vpop.permute.xlu0 %971
        %973 = vrot.lane.b32.xlu0 %v839, 126
        %v974 = vpop.permute.xlu0 %973
        %975 = vrot.lane.b32.xlu0 %v844, 126
        %v976 = vpop.permute.xlu0 %975
        %977 = vrot.lane.b32.xlu0 %v849, 126
        %v978 = vpop.permute.xlu0 %977
        %979 = vrot.lane.b32.xlu0 %v854, 126
        %v980 = vpop.permute.xlu0 %979
        %981 = vrot.lane.b32.xlu0 %v859, 126
        %v982 = vpop.permute.xlu0 %981
        %983 = vrot.lane.b32.xlu0 %v864, 126
        %v984 = vpop.permute.xlu0 %983
        %985 = vrot.lane.b32.xlu0 %v869, 126
        %v986 = vpop.permute.xlu0 %985
        %987 = vrot.lane.b32.xlu0 %v874, 126
        %v988 = vpop.permute.xlu0 %987
        %v1005 = vmax.f32 %v941, %v958
        %v1006 = vmax.f32 %v942, %v960
        %v1007 = vmax.f32 %v943, %v962
        %v1008 = vmax.f32 %v944, %v964
        %v1009 = vmax.f32 %v945, %v966
        %v1010 = vmax.f32 %v946, %v968
        %v1011 = vmax.f32 %v947, %v970
        %v1012 = vmax.f32 %v948, %v972
        %v1013 = vmax.f32 %v949, %v974
        %v1014 = vmax.f32 %v950, %v976
        %v1015 = vmax.f32 %v951, %v978
        %v1016 = vmax.f32 %v952, %v980
        %v1017 = vmax.f32 %v953, %v982
        %v1018 = vmax.f32 %v954, %v984
        %v1019 = vmax.f32 %v955, %v986
        %v1020 = vmax.f32 %v956, %v988
        %1022 = vset.pattern.permute.xlu0 0
        %1023 = vperm.xlu0 %1022, %v1005
        %v1024 = vpop.permute.xlu0 %1023
        %1027 = vset.pattern.permute.xlu0 0
        %1028 = vperm.xlu0 %1027, %v1006
        %v1029 = vpop.permute.xlu0 %1028
        %1032 = vset.pattern.permute.xlu0 0
        %1033 = vperm.xlu0 %1032, %v1007
        %v1034 = vpop.permute.xlu0 %1033
        %1037 = vset.pattern.permute.xlu0 0
        %1038 = vperm.xlu0 %1037, %v1008
        %v1039 = vpop.permute.xlu0 %1038
        %1042 = vset.pattern.permute.xlu0 0
        %1043 = vperm.xlu0 %1042, %v1009
        %v1044 = vpop.permute.xlu0 %1043
        %1047 = vset.pattern.permute.xlu0 0
        %1048 = vperm.xlu0 %1047, %v1010
        %v1049 = vpop.permute.xlu0 %1048
        %1052 = vset.pattern.permute.xlu0 0
        %1053 = vperm.xlu0 %1052, %v1011
        %v1054 = vpop.permute.xlu0 %1053
        %1057 = vset.pattern.permute.xlu0 0
        %1058 = vperm.xlu0 %1057, %v1012
        %v1059 = vpop.permute.xlu0 %1058
        %1062 = vset.pattern.permute.xlu0 0
        %1063 = vperm.xlu0 %1062, %v1013
        %v1064 = vpop.permute.xlu0 %1063
        %1067 = vset.pattern.permute.xlu0 0
        %1068 = vperm.xlu0 %1067, %v1014
        %v1069 = vpop.permute.xlu0 %1068
        %1072 = vset.pattern.permute.xlu0 0
        %1073 = vperm.xlu0 %1072, %v1015
        %v1074 = vpop.permute.xlu0 %1073
        %1077 = vset.pattern.permute.xlu0 0
        %1078 = vperm.xlu0 %1077, %v1016
        %v1079 = vpop.permute.xlu0 %1078
        %1082 = vset.pattern.permute.xlu0 0
        %1083 = vperm.xlu0 %1082, %v1017
        %v1084 = vpop.permute.xlu0 %1083
        %1087 = vset.pattern.permute.xlu0 0
        %1088 = vperm.xlu0 %1087, %v1018
        %v1089 = vpop.permute.xlu0 %1088
        %1092 = vset.pattern.permute.xlu0 0
        %1093 = vperm.xlu0 %1092, %v1019
        %v1094 = vpop.permute.xlu0 %1093
        %1097 = vset.pattern.permute.xlu0 0
        %1098 = vperm.xlu0 %1097, %v1020
        %v1099 = vpop.permute.xlu0 %1098
        %v1101 = vsub.f32 %v799, %v1024
        %v1102 = vsub.f32 %v804, %v1029
        %v1103 = vsub.f32 %v809, %v1034
        %v1104 = vsub.f32 %v814, %v1039
        %v1105 = vsub.f32 %v819, %v1044
        %v1106 = vsub.f32 %v824, %v1049
        %v1107 = vsub.f32 %v829, %v1054
        %v1108 = vsub.f32 %v834, %v1059
        %v1109 = vsub.f32 %v839, %v1064
        %v1110 = vsub.f32 %v844, %v1069
        %v1111 = vsub.f32 %v849, %v1074
        %v1112 = vsub.f32 %v854, %v1079
        %v1113 = vsub.f32 %v859, %v1084
        %v1114 = vsub.f32 %v864, %v1089
        %v1115 = vsub.f32 %v869, %v1094
        %v1116 = vsub.f32 %v874, %v1099
        %v1117 = vmul.f32 %v1101, 1.442695
        %v1118 = vpow.pop %v1117
        %v1119 = vmul.f32 %v1102, 1.442695
        %v1120 = vpow.pop %v1119
        %v1121 = vmul.f32 %v1103, 1.442695
        %v1122 = vpow.pop %v1121
        %v1123 = vmul.f32 %v1104, 1.442695
        %v1124 = vpow.pop %v1123
        %v1125 = vmul.f32 %v1105, 1.442695
        %v1126 = vpow.pop %v1125
        %v1127 = vmul.f32 %v1106, 1.442695
        %v1128 = vpow.pop %v1127
        %v1129 = vmul.f32 %v1107, 1.442695
        %v1130 = vpow.pop %v1129
        %v1131 = vmul.f32 %v1108, 1.442695
        %v1132 = vpow.pop %v1131
        %v1133 = vmul.f32 %v1109, 1.442695
        %v1134 = vpow.pop %v1133
        %v1135 = vmul.f32 %v1110, 1.442695
        %v1136 = vpow.pop %v1135
        %v1137 = vmul.f32 %v1111, 1.442695
        %v1138 = vpow.pop %v1137
        %v1139 = vmul.f32 %v1112, 1.442695
        %v1140 = vpow.pop %v1139
        %v1141 = vmul.f32 %v1113, 1.442695
        %v1142 = vpow.pop %v1141
        %v1143 = vmul.f32 %v1114, 1.442695
        %v1144 = vpow.pop %v1143
        %v1145 = vmul.f32 %v1115, 1.442695
        %v1146 = vpow.pop %v1145
        %v1147 = vmul.f32 %v1116, 1.442695
        %v1148 = vpow.pop %v1147
        %1165 = vrot.lane.b32.xlu0 %v1118, 127
        %v1166 = vpop.permute.xlu0 %1165
        %1167 = vrot.lane.b32.xlu0 %v1120, 127
        %v1168 = vpop.permute.xlu0 %1167
        %1169 = vrot.lane.b32.xlu0 %v1122, 127
        %v1170 = vpop.permute.xlu0 %1169
        %1171 = vrot.lane.b32.xlu0 %v1124, 127
        %v1172 = vpop.permute.xlu0 %1171
        %1173 = vrot.lane.b32.xlu0 %v1126, 127
        %v1174 = vpop.permute.xlu0 %1173
        %1175 = vrot.lane.b32.xlu0 %v1128, 127
        %v1176 = vpop.permute.xlu0 %1175
        %1177 = vrot.lane.b32.xlu0 %v1130, 127
        %v1178 = vpop.permute.xlu0 %1177
        %1179 = vrot.lane.b32.xlu0 %v1132, 127
        %v1180 = vpop.permute.xlu0 %1179
        %1181 = vrot.lane.b32.xlu0 %v1134, 127
        %v1182 = vpop.permute.xlu0 %1181
        %1183 = vrot.lane.b32.xlu0 %v1136, 127
        %v1184 = vpop.permute.xlu0 %1183
        %1185 = vrot.lane.b32.xlu0 %v1138, 127
        %v1186 = vpop.permute.xlu0 %1185
        %1187 = vrot.lane.b32.xlu0 %v1140, 127
        %v1188 = vpop.permute.xlu0 %1187
        %1189 = vrot.lane.b32.xlu0 %v1142, 127
        %v1190 = vpop.permute.xlu0 %1189
        %1191 = vrot.lane.b32.xlu0 %v1144, 127
        %v1192 = vpop.permute.xlu0 %1191
        %1193 = vrot.lane.b32.xlu0 %v1146, 127
        %v1194 = vpop.permute.xlu0 %1193
        %1195 = vrot.lane.b32.xlu0 %v1148, 127
        %v1196 = vpop.permute.xlu0 %1195
        %v1213 = vadd.f32 %v1118, %v1166
        %v1214 = vadd.f32 %v1120, %v1168
        %v1215 = vadd.f32 %v1122, %v1170
        %v1216 = vadd.f32 %v1124, %v1172
        %v1217 = vadd.f32 %v1126, %v1174
        %v1218 = vadd.f32 %v1128, %v1176
        %v1219 = vadd.f32 %v1130, %v1178
        %v1220 = vadd.f32 %v1132, %v1180
        %v1221 = vadd.f32 %v1134, %v1182
        %v1222 = vadd.f32 %v1136, %v1184
        %v1223 = vadd.f32 %v1138, %v1186
        %v1224 = vadd.f32 %v1140, %v1188
        %v1225 = vadd.f32 %v1142, %v1190
        %v1226 = vadd.f32 %v1144, %v1192
        %v1227 = vadd.f32 %v1146, %v1194
        %v1228 = vadd.f32 %v1148, %v1196
        %1229 = vrot.lane.b32.xlu0 %v1118, 126
        %v1230 = vpop.permute.xlu0 %1229
        %1231 = vrot.lane.b32.xlu0 %v1120, 126
        %v1232 = vpop.permute.xlu0 %1231
        %1233 = vrot.lane.b32.xlu0 %v1122, 126
        %v1234 = vpop.permute.xlu0 %1233
        %1235 = vrot.lane.b32.xlu0 %v1124, 126
        %v1236 = vpop.permute.xlu0 %1235
        %1237 = vrot.lane.b32.xlu0 %v1126, 126
        %v1238 = vpop.permute.xlu0 %1237
        %1239 = vrot.lane.b32.xlu0 %v1128, 126
        %v1240 = vpop.permute.xlu0 %1239
        %1241 = vrot.lane.b32.xlu0 %v1130, 126
        %v1242 = vpop.permute.xlu0 %1241
        %1243 = vrot.lane.b32.xlu0 %v1132, 126
        %v1244 = vpop.permute.xlu0 %1243
        %1245 = vrot.lane.b32.xlu0 %v1134, 126
        %v1246 = vpop.permute.xlu0 %1245
        %1247 = vrot.lane.b32.xlu0 %v1136, 126
        %v1248 = vpop.permute.xlu0 %1247
        %1249 = vrot.lane.b32.xlu0 %v1138, 126
        %v1250 = vpop.permute.xlu0 %1249
        %1251 = vrot.lane.b32.xlu0 %v1140, 126
        %v1252 = vpop.permute.xlu0 %1251
        %1253 = vrot.lane.b32.xlu0 %v1142, 126
        %v1254 = vpop.permute.xlu0 %1253
        %1255 = vrot.lane.b32.xlu0 %v1144, 126
        %v1256 = vpop.permute.xlu0 %1255
        %1257 = vrot.lane.b32.xlu0 %v1146, 126
        %v1258 = vpop.permute.xlu0 %1257
        %1259 = vrot.lane.b32.xlu0 %v1148, 126
        %v1260 = vpop.permute.xlu0 %1259
        %v1277 = vadd.f32 %v1213, %v1230
        %v1278 = vadd.f32 %v1214, %v1232
        %v1279 = vadd.f32 %v1215, %v1234
        %v1280 = vadd.f32 %v1216, %v1236
        %v1281 = vadd.f32 %v1217, %v1238
        %v1282 = vadd.f32 %v1218, %v1240
        %v1283 = vadd.f32 %v1219, %v1242
        %v1284 = vadd.f32 %v1220, %v1244
        %v1285 = vadd.f32 %v1221, %v1246
        %v1286 = vadd.f32 %v1222, %v1248
        %v1287 = vadd.f32 %v1223, %v1250
        %v1288 = vadd.f32 %v1224, %v1252
        %v1289 = vadd.f32 %v1225, %v1254
        %v1290 = vadd.f32 %v1226, %v1256
        %v1291 = vadd.f32 %v1227, %v1258
        %v1292 = vadd.f32 %v1228, %v1260
        %v1293 = vrcp.pop %v1277
        %v1294 = vrcp.pop %v1278
        %v1295 = vrcp.pop %v1279
        %v1296 = vrcp.pop %v1280
        %v1297 = vrcp.pop %v1281
        %v1298 = vrcp.pop %v1282
        %v1299 = vrcp.pop %v1283
        %v1300 = vrcp.pop %v1284
        %v1301 = vrcp.pop %v1285
        %v1302 = vrcp.pop %v1286
        %v1303 = vrcp.pop %v1287
        %v1304 = vrcp.pop %v1288
        %v1305 = vrcp.pop %v1289
        %v1306 = vrcp.pop %v1290
        %v1307 = vrcp.pop %v1291
        %v1308 = vrcp.pop %v1292
        %1310 = vset.pattern.permute.xlu0 0
        %1311 = vperm.xlu0 %1310, %v1293
        %v1312 = vpop.permute.xlu0 %1311
        %1315 = vset.pattern.permute.xlu0 0
        %1316 = vperm.xlu0 %1315, %v1294
        %v1317 = vpop.permute.xlu0 %1316
        %1320 = vset.pattern.permute.xlu0 0
        %1321 = vperm.xlu0 %1320, %v1295
        %v1322 = vpop.permute.xlu0 %1321
        %1325 = vset.pattern.permute.xlu0 0
        %1326 = vperm.xlu0 %1325, %v1296
        %v1327 = vpop.permute.xlu0 %1326
        %1330 = vset.pattern.permute.xlu0 0
        %1331 = vperm.xlu0 %1330, %v1297
        %v1332 = vpop.permute.xlu0 %1331
        %1335 = vset.pattern.permute.xlu0 0
        %1336 = vperm.xlu0 %1335, %v1298
        %v1337 = vpop.permute.xlu0 %1336
        %1340 = vset.pattern.permute.xlu0 0
        %1341 = vperm.xlu0 %1340, %v1299
        %v1342 = vpop.permute.xlu0 %1341
        %1345 = vset.pattern.permute.xlu0 0
        %1346 = vperm.xlu0 %1345, %v1300
        %v1347 = vpop.permute.xlu0 %1346
        %1350 = vset.pattern.permute.xlu0 0
        %1351 = vperm.xlu0 %1350, %v1301
        %v1352 = vpop.permute.xlu0 %1351
        %1355 = vset.pattern.permute.xlu0 0
        %1356 = vperm.xlu0 %1355, %v1302
        %v1357 = vpop.permute.xlu0 %1356
        %1360 = vset.pattern.permute.xlu0 0
        %1361 = vperm.xlu0 %1360, %v1303
        %v1362 = vpop.permute.xlu0 %1361
        %1365 = vset.pattern.permute.xlu0 0
        %1366 = vperm.xlu0 %1365, %v1304
        %v1367 = vpop.permute.xlu0 %1366
        %1370 = vset.pattern.permute.xlu0 0
        %1371 = vperm.xlu0 %1370, %v1305
        %v1372 = vpop.permute.xlu0 %1371
        %1375 = vset.pattern.permute.xlu0 0
        %1376 = vperm.xlu0 %1375, %v1306
        %v1377 = vpop.permute.xlu0 %1376
        %1380 = vset.pattern.permute.xlu0 0
        %1381 = vperm.xlu0 %1380, %v1307
        %v1382 = vpop.permute.xlu0 %1381
        %1385 = vset.pattern.permute.xlu0 0
        %1386 = vperm.xlu0 %1385, %v1308
        %v1387 = vpop.permute.xlu0 %1386
        %v1389 = vmul.f32 %v1118, %v1312
        %v1390 = vmul.f32 %v1120, %v1317
        %v1391 = vmul.f32 %v1122, %v1322
        %v1392 = vmul.f32 %v1124, %v1327
        %v1393 = vmul.f32 %v1126, %v1332
        %v1394 = vmul.f32 %v1128, %v1337
        %v1395 = vmul.f32 %v1130, %v1342
        %v1396 = vmul.f32 %v1132, %v1347
        %v1397 = vmul.f32 %v1134, %v1352
        %v1398 = vmul.f32 %v1136, %v1357
        %v1399 = vmul.f32 %v1138, %v1362
        %v1400 = vmul.f32 %v1140, %v1367
        %v1401 = vmul.f32 %v1142, %v1372
        %v1402 = vmul.f32 %v1144, %v1377
        %v1403 = vmul.f32 %v1146, %v1382
        %v1404 = vmul.f32 %v1148, %v1387
        %v1405 = vpack.c.bf16 %v1390, %v1389
        %v1406 = vpack.c.bf16 %v1392, %v1391
        %v1407 = vpack.c.bf16 %v1394, %v1393
        %v1408 = vpack.c.bf16 %v1396, %v1395
        %v1409 = vpack.c.bf16 %v1398, %v1397
        %v1410 = vpack.c.bf16 %v1400, %v1399
        %v1411 = vpack.c.bf16 %v1402, %v1401
        %v1412 = vpack.c.bf16 %v1404, %v1403
        %v1421 = vunpack.c.l.b16 %v1405
        %v1422 = vunpack.c.h.b16 %v1405
        %v1423 = vunpack.c.l.b16 %v1406
        %v1424 = vunpack.c.h.b16 %v1406
        %v1425 = vunpack.c.l.b16 %v1407
        %v1426 = vunpack.c.h.b16 %v1407
        %v1427 = vunpack.c.l.b16 %v1408
        %v1428 = vunpack.c.h.b16 %v1408
        %v1429 = vunpack.c.l.b16 %v1409
        %v1430 = vunpack.c.h.b16 %v1409
        %v1431 = vunpack.c.l.b16 %v1410
        %v1432 = vunpack.c.h.b16 %v1410
        %v1433 = vunpack.c.l.b16 %v1411
        %v1434 = vunpack.c.h.b16 %v1411
        %v1435 = vunpack.c.l.b16 %v1412
        %v1436 = vunpack.c.h.b16 %v1412
        %v1437 = vpack.c.b16 %v1421, %v1421
        %v1438 = vpack.c.b16 %v1422, %v1422
        %v1439 = vpack.c.b16 %v1423, %v1423
        %v1440 = vpack.c.b16 %v1424, %v1424
        %v1441 = vpack.c.b16 %v1425, %v1425
        %v1442 = vpack.c.b16 %v1426, %v1426
        %v1443 = vpack.c.b16 %v1427, %v1427
        %v1444 = vpack.c.b16 %v1428, %v1428
        %v1445 = vpack.c.b16 %v1429, %v1429
        %v1446 = vpack.c.b16 %v1430, %v1430
        %v1447 = vpack.c.b16 %v1431, %v1431
        %v1448 = vpack.c.b16 %v1432, %v1432
        %v1449 = vpack.c.b16 %v1433, %v1433
        %v1450 = vpack.c.b16 %v1434, %v1434
        %v1451 = vpack.c.b16 %v1435, %v1435
        %v1452 = vpack.c.b16 %v1436, %v1436
        %1469 = vst [vmem:[%s272] sm:$0xf] %v1437
        %1470 = vst [vmem:[%s272 + $0x4] sm:$0xf] %v1438
        %1471 = vst [vmem:[%s272 + $0x8] sm:$0xf] %v1439
        %1472 = vst [vmem:[%s272 + $0xc] sm:$0xf] %v1440
        %1473 = vst [vmem:[%s272 + $0x10] sm:$0xf] %v1441
        %1474 = vst [vmem:[%s272 + $0x14] sm:$0xf] %v1442
        %1475 = vst [vmem:[%s272 + $0x18] sm:$0xf] %v1443
        %1476 = vst [vmem:[%s272 + $0x1c] sm:$0xf] %v1444
        %1477 = vst [vmem:[%s272 + $0x20] sm:$0xf] %v1445
        %1478 = vst [vmem:[%s272 + $0x24] sm:$0xf] %v1446
        %1479 = vst [vmem:[%s272 + $0x28] sm:$0xf] %v1447
        %1480 = vst [vmem:[%s272 + $0x2c] sm:$0xf] %v1448
        %1481 = vst [vmem:[%s272 + $0x30] sm:$0xf] %v1449
        %1482 = vst [vmem:[%s272 + $0x34] sm:$0xf] %v1450
        %1483 = vst [vmem:[%s272 + $0x38] sm:$0xf] %v1451
        %1484 = vst [vmem:[%s272 + $0x3c] sm:$0xf] %v1452
        %s1485 = sand.u32 %s181, 1
        %s1486 = scalar_lea.sflag [#allocation3], %s1485
        %s1487 = sand.u32 %s181, 1
        %s1488 = smul.addr %s1487, 64
        %s1489 = scalar_lea.vmem [#allocation2], %s1488
        // Predicated region
        $region49: #{tpu_custom_call.1} parent=47 // pred_check
          %p1490 = pneg %p191
        $region50: #{tpu_custom_call.1} parent=47 // pred_check_branch
          %1492 = sbr.rel (%p1490) target = $region52
        $region51: #{tpu_custom_call.1} parent=47 // pred_region
          %s1493 = smul.u32 16, %s21
          %s1495 = ssub.s32 1024, 1024
          %1496 = vsyncadd %s1486, %s1495
          %s1497 = smul.addr %s1493, 64
          %s1498 = scalar_lea.hbm %s7, %s1497
          %s1499 = sshll.u32 %s1489, 4
          %s1500 = int_to_ptr.vmem [resolvable:$true] %s1499
          %1505 = dma.vmem_to_hbm [thread:$0]  %s1500, 1024, %s1498, %s1486, 64, 64, 4
        $region52: #{tpu_custom_call.1} parent=47 // pred_fallthru
          _
      $region48: #{tpu_custom_call.1} parent=5 // pred_fallthru
        _
      %p1506 = scmp.le.s32.totalorder 2, %s16
      // Predicated region
      $region53: #{tpu_custom_call.1} parent=5 // pred_check
        %p1507 = pneg %p1506
      $region54: #{tpu_custom_call.1} parent=5 // pred_check_branch
        %1509 = sbr.rel (%p1507) target = $region56
      $region55: #{tpu_custom_call.1} parent=5 // pred_region
        %s1510 = ssub.s32 %s16, 2
        // Predicated region
        $region57: #{tpu_custom_call.1} parent=55 // pred_check
          %p1511 = pneg %p197
        $region58: #{tpu_custom_call.1} parent=55 // pred_check_branch
          %1513 = sbr.rel (%p1511) target = $region60
        $region59: #{tpu_custom_call.1} parent=55 // pred_region
          %s1514 = sand.u32 %s182, 1
          %s1515 = scalar_lea.sflag [#allocation3], %s1514
          %s1516 = sand.u32 %s182, 1
          %s1517 = smul.addr %s1516, 64
          %s1518 = scalar_lea.vmem [#allocation2], %s1517
          %1519 = dma.done %s1515, 1024
        $region60: #{tpu_custom_call.1} parent=55 // pred_fallthru
          _
      $region56: #{tpu_custom_call.1} parent=5 // pred_fallthru
        _
    $region6: #{tpu_custom_call.1} parent=1 // loop_footer
      %s20 = sadd.s32 1, %s16
    $region7: #{tpu_custom_call.1} parent=1 // loop_footer_branch
      %15 = sbr.rel target = $region3
    $region8: #{tpu_custom_call.1} parent=1 // loop_exit
      _
    %1520 = vsyncpa [#allocation3], 1
    %s1521 = scalar_lea.sflag [#allocation3], 1
    %1522 = vsyncpa %s1521, 1

</llo_original>
